<compile_context>
chip_gen: v7x
topology: tpu7x:2x2x1
jax: 0.10.0
libtpu: 0.0.40
codegen_flags: <defaults>
</compile_context>

<pallas_src>
import functools

import jax
import jax.numpy as jnp
from jax.experimental import pallas as pl
from jax.experimental.pallas import tpu as pltpu


def _denoiser_mlp_kernel(z_ref, w1t_ref, b1_ref, w2t_ref, b2_ref, o_ref, *, tmc):
    """fc2(relu(fc1(z))) on a transposed, lane-dense tile.

    z_ref   : (nt_in,  TM)   batch on the lane (128-wide) axis
    w1t_ref : (hidden, nt_in)
    b1_ref  : (hidden, 1)
    w2t_ref : (nt_out, hidden)
    b2_ref  : (nt_out, 1)
    o_ref   : (nt_out, TM)
    """
    hidden, nt_in = w1t_ref.shape
    tm = z_ref.shape[1]

    # Weights/biases: tiny, loaded once per grid step, reused by all chunks.
    w1t = w1t_ref[...]
    b1 = b1_ref[...]            # (hidden, 1)
    w2t = w2t_ref[...]          # (nt_out, hidden)
    b2 = b2_ref[...]            # (nt_out, 1)

    n_chunks = tm // tmc        # static
    for c in range(n_chunks):   # static unroll: chunks interleave on VPU/MXU slots
        lo = c * tmc
        z = z_ref[:, lo:lo + tmc]                     # (nt_in, tmc) static slice

        # ---- fc1 ---------------------------------------------------------
        if nt_in <= 8:
            # Tiny K: keep it off the MXU. nt_in unrolled broadcast-FMA outer
            # products on otherwise-idle VPU slots; bias folded into k = 0.
            h = b1 + w1t[:, 0:1] * z[0:1, :]
            for k in range(1, nt_in):
                h = h + w1t[:, k:k + 1] * z[k:k + 1, :]
        else:
            h = b1 + jnp.dot(w1t, z, preferred_element_type=jnp.float32)
        h = jnp.maximum(h, 0.0)                       # ReLU, (hidden, tmc)

        # ---- fc2 (K = hidden -> MXU) --------------------------------------
        o = jnp.dot(w2t, h, preferred_element_type=jnp.float32) + b2
        o_ref[:, lo:lo + tmc] = o.astype(o_ref.dtype)


def _select_tile(b, tm_request):
    """Pick (tm, tmc): lane tile (multiple of 128, >=2 tiles if B>=256) and sub-chunk."""
    tm = max(128, (int(tm_request) // 128) * 128)     # multiple-of-128 rule
    b_up = pl.cdiv(b, 128) * 128
    tm = min(tm, b_up)                                # never bigger than padded batch
    if b >= 256:
        # Keep >= 2 tiles so ("parallel",) feeds both TensorCores on v7x.
        half = max(128, ((b_up // 2) // 128) * 128)
        tm = min(tm, half)
    # Largest lane sub-chunk in {512, 256, 128} dividing tm: h stays <= 32 vregs.
    tmc = 128
    for cand in (512, 256, 128):
        if tm % cand == 0:
            tmc = cand
            break
    return tm, tmc


def detnet_denoiser_forward(zt, params_dict, tm=2048):
    """Pallas equivalent of DetNet_Denoiser.forward.

    zt          : (B, NT_param) float32
    params_dict : 'w1' (NT_param, 16*NT_param), 'b1' (1, 16*NT_param),
                  'w2' (16*NT_param, 2*NT_param), 'b2' (1, 2*NT_param)
                  (weights already stored as (in_features, out_features))
    Returns (shatt1, denoiser_helper) matching the PyTorch module.
    """
    w1, b1, w2, b2 = (params_dict[k] for k in ("w1", "b1", "w2", "b2"))
    B, nt_in = zt.shape
    hidden = w1.shape[1]
    nt_out = w2.shape[1]

    tm, tmc = _select_tile(B, tm)

    # Batch on the lane axis (lane-dense loads/stores). No host-side pad: the
    # partial last block is handled by Pallas (OOB reads discarded via dropped
    # OOB stores).  Transposes fuse under jit.
    z_t = zt.T.astype(jnp.float32)            # (nt_in, B)
    w1_t = w1.T                               # (hidden, nt_in)
    b1_c = b1.reshape(hidden, 1)              # (hidden, 1)
    w2_t = w2.T                               # (nt_out, hidden)
    b2_c = b2.reshape(nt_out, 1)              # (nt_out, 1)

    grid = (pl.cdiv(B, tm),)

    out_t = pl.pallas_call(
        functools.partial(_denoiser_mlp_kernel, tmc=tmc),
        out_shape=jax.ShapeDtypeStruct((nt_out, B), jnp.float32),
        grid=grid,
        in_specs=[
            pl.BlockSpec((nt_in, tm), lambda i: (0, i)),        # activations: tiled over batch
            pl.BlockSpec((hidden, nt_in), lambda i: (0, 0)),    # weights/biases: VMEM-resident
            pl.BlockSpec((hidden, 1), lambda i: (0, 0)),
            pl.BlockSpec((nt_out, hidden), lambda i: (0, 0)),
            pl.BlockSpec((nt_out, 1), lambda i: (0, 0)),
        ],
        out_specs=pl.BlockSpec((nt_out, tm), lambda i: (0, i)),  # lane-dense output slab
        compiler_params=pltpu.CompilerParams(
            dimension_semantics=("parallel",),   # shard batch tiles across TCs (v7x)
        ),
    )(z_t, w1_t, b1_c, w2_t, b2_c)

    shatt1 = out_t.T                          # back to (B, nt_out)
    denoiser_helper = {}
    return shatt1, denoiser_helper


def init_params(key, nt_param):
    """Deterministic synthetic parameters (shapes from DetNet_Denoiser.__init__)."""
    NT2 = 2 * nt_param          # self.NT
    hidden = 8 * NT2            # fc1 out_features
    k1, k2, k3, k4 = jax.random.split(key, 4)
    # PyTorch Linear stores weight as (out, in); we keep the transposed
    # (in, out) form so the math is z @ W + b.
    bound1 = 1.0 / jnp.sqrt(nt_param)
    bound2 = 1.0 / jnp.sqrt(hidden)
    w1 = jax.random.uniform(k1, (nt_param, hidden), jnp.float32, -bound1, bound1)
    b1 = jax.random.uniform(k2, (1, hidden), jnp.float32, -bound1, bound1)
    w2 = jax.random.uniform(k3, (hidden, NT2), jnp.float32, -bound2, bound2)
    b2 = jax.random.uniform(k4, (1, NT2), jnp.float32, -bound2, bound2)
    return {"w1": w1, "b1": b1, "w2": w2, "b2": b2}


if __name__ == "__main__":
    key = jax.random.PRNGKey(0)
    kp, kz1, kz2 = jax.random.split(key, 3)

    NT_param = 4          # params['NT']  -> fc1 in=4, hidden=64, fc2 out=8
    params = init_params(kp, NT_param)

    fwd = jax.jit(detnet_denoiser_forward, static_argnames=("tm",))

    def ref_fn(z):
        return jnp.maximum(z @ params["w1"] + params["b1"], 0.0) @ params["w2"] + params["b2"]

    # Case 1: ragged batch -> partial last lane-block, no host pad/slice.
    B1 = 300
    zt1 = jax.random.normal(kz1, (B1, NT_param), jnp.float32)
    out1, helper1 = fwd(zt1, params)
    out1 = jax.block_until_ready(out1)
    assert out1.shape == (B1, 2 * NT_param)
    assert helper1 == {}
    assert jnp.allclose(out1, ref_fn(zt1), atol=1e-4, rtol=1e-4)

    # Case 2: larger batch -> TM capped for >=2 tiles + in-kernel lane sub-chunking.
    B2 = 2048
    zt2 = jax.random.normal(kz2, (B2, NT_param), jnp.float32)
    out2, _ = fwd(zt2, params, tm=4096)
    out2 = jax.block_until_ready(out2)
    assert out2.shape == (B2, 2 * NT_param)
    assert jnp.allclose(out2, ref_fn(zt2), atol=1e-4, rtol=1e-4)

    print("KERNEL_OK")
</pallas_src>

<mosaic_0001>
module attributes {stable_mosaic.version = 11 : i64} {
  func.func @_denoiser_mlp_kernel(%arg0: i32, %arg1: memref<4x128xf32, #tpu.memory_space<vmem>>, %arg2: memref<64x4xf32, #tpu.memory_space<vmem>>, %arg3: memref<64x1xf32, #tpu.memory_space<vmem>>, %arg4: memref<8x64xf32, #tpu.memory_space<vmem>>, %arg5: memref<8x1xf32, #tpu.memory_space<vmem>>, %arg6: memref<8x128xf32, #tpu.memory_space<vmem>>) attributes {dimension_semantics = [#tpu.dimension_semantics<parallel>], iteration_bounds = array<i64: 3>, scalar_prefetch = 0 : i64, scratch_operands = 0 : i64, tpu.core_type = #tpu.core_type<tc>, window_params = [{transform_indices = @transform_0, window_bounds = array<i64: 4, 128>}, {pipeline_mode = #tpu.pipeline_mode<synchronous>, transform_indices = @transform_1, window_bounds = array<i64: 64, 4>}, {pipeline_mode = #tpu.pipeline_mode<synchronous>, transform_indices = @transform_2, window_bounds = array<i64: 64, 1>}, {pipeline_mode = #tpu.pipeline_mode<synchronous>, transform_indices = @transform_3, window_bounds = array<i64: 8, 64>}, {pipeline_mode = #tpu.pipeline_mode<synchronous>, transform_indices = @transform_4, window_bounds = array<i64: 8, 1>}, {transform_indices = @transform_5, window_bounds = array<i64: 8, 128>}]} {
    %c0 = arith.constant 0 : index
    %c0_0 = arith.constant 0 : index
    %0 = vector.load %arg2[%c0, %c0_0] : memref<64x4xf32, #tpu.memory_space<vmem>>, vector<64x4xf32>
    %c0_1 = arith.constant 0 : index
    %c0_2 = arith.constant 0 : index
    %1 = vector.load %arg3[%c0_1, %c0_2] : memref<64x1xf32, #tpu.memory_space<vmem>>, vector<64x1xf32>
    %c0_3 = arith.constant 0 : index
    %c0_4 = arith.constant 0 : index
    %2 = vector.load %arg4[%c0_3, %c0_4] : memref<8x64xf32, #tpu.memory_space<vmem>>, vector<8x64xf32>
    %c0_5 = arith.constant 0 : index
    %c0_6 = arith.constant 0 : index
    %3 = vector.load %arg5[%c0_5, %c0_6] : memref<8x1xf32, #tpu.memory_space<vmem>>, vector<8x1xf32>
    %c0_7 = arith.constant 0 : index
    %c0_8 = arith.constant 0 : index
    %4 = vector.load %arg1[%c0_7, %c0_8] : memref<4x128xf32, #tpu.memory_space<vmem>>, vector<4x128xf32>
    %5 = vector.extract_strided_slice %0 {offsets = [0, 0], sizes = [64, 1], strides = [1, 1]} : vector<64x4xf32> to vector<64x1xf32>
    %6 = vector.extract_strided_slice %4 {offsets = [0, 0], sizes = [1, 128], strides = [1, 1]} : vector<4x128xf32> to vector<1x128xf32>
    %7 = vector.broadcast %5 : vector<64x1xf32> to vector<64x128xf32>
    %8 = vector.broadcast %6 : vector<1x128xf32> to vector<64x128xf32>
    %9 = arith.mulf %7, %8 : vector<64x128xf32>
    %10 = vector.broadcast %1 : vector<64x1xf32> to vector<64x128xf32>
    %11 = arith.addf %10, %9 : vector<64x128xf32>
    %12 = vector.extract_strided_slice %0 {offsets = [0, 1], sizes = [64, 1], strides = [1, 1]} : vector<64x4xf32> to vector<64x1xf32>
    %13 = vector.extract_strided_slice %4 {offsets = [1, 0], sizes = [1, 128], strides = [1, 1]} : vector<4x128xf32> to vector<1x128xf32>
    %14 = vector.broadcast %12 : vector<64x1xf32> to vector<64x128xf32>
    %15 = vector.broadcast %13 : vector<1x128xf32> to vector<64x128xf32>
    %16 = arith.mulf %14, %15 : vector<64x128xf32>
    %17 = arith.addf %11, %16 : vector<64x128xf32>
    %18 = vector.extract_strided_slice %0 {offsets = [0, 2], sizes = [64, 1], strides = [1, 1]} : vector<64x4xf32> to vector<64x1xf32>
    %19 = vector.extract_strided_slice %4 {offsets = [2, 0], sizes = [1, 128], strides = [1, 1]} : vector<4x128xf32> to vector<1x128xf32>
    %20 = vector.broadcast %18 : vector<64x1xf32> to vector<64x128xf32>
    %21 = vector.broadcast %19 : vector<1x128xf32> to vector<64x128xf32>
    %22 = arith.mulf %20, %21 : vector<64x128xf32>
    %23 = arith.addf %17, %22 : vector<64x128xf32>
    %24 = vector.extract_strided_slice %0 {offsets = [0, 3], sizes = [64, 1], strides = [1, 1]} : vector<64x4xf32> to vector<64x1xf32>
    %25 = vector.extract_strided_slice %4 {offsets = [3, 0], sizes = [1, 128], strides = [1, 1]} : vector<4x128xf32> to vector<1x128xf32>
    %26 = vector.broadcast %24 : vector<64x1xf32> to vector<64x128xf32>
    %27 = vector.broadcast %25 : vector<1x128xf32> to vector<64x128xf32>
    %28 = arith.mulf %26, %27 : vector<64x128xf32>
    %29 = arith.addf %23, %28 : vector<64x128xf32>
    %cst = arith.constant 0.000000e+00 : f32
    %30 = vector.broadcast %cst : f32 to vector<64x128xf32>
    %31 = arith.maximumf %29, %30 : vector<64x128xf32>
    %cst_9 = arith.constant dense<0.000000e+00> : vector<8x128xf32>
    %32 = tpu.matmul %2, %31, %cst_9 {dimension_numbers = #tpu.dot_dimension_numbers<[1], [0], [0], [1], [0, 0, 1, 1], [], []>} : vector<8x64xf32>, vector<64x128xf32>, vector<8x128xf32> -> vector<8x128xf32>
    %33 = vector.broadcast %3 : vector<8x1xf32> to vector<8x128xf32>
    %34 = arith.addf %32, %33 : vector<8x128xf32>
    %c0_10 = arith.constant 0 : index
    %c0_11 = arith.constant 0 : index
    %35 = vector.load %arg6[%c0_10, %c0_11] : memref<8x128xf32, #tpu.memory_space<vmem>>, vector<8x128xf32>
    tpu.vector_store %arg6[%c0_10, %c0_11], %34 {strides = array<i32>} : memref<8x128xf32, #tpu.memory_space<vmem>>, vector<8x128xf32>,
    return
  }
  func.func @transform_0(%arg0: i32) -> (i32, i32) {
    %c0_i32 = arith.constant 0 : i32
    %c0_i32_0 = arith.constant 0 : i32
    return %c0_i32, %arg0 : i32, i32
  }
  func.func @transform_1(%arg0: i32) -> (i32, i32) {
    %c0_i32 = arith.constant 0 : i32
    %c0_i32_0 = arith.constant 0 : i32
    %c0_i32_1 = arith.constant 0 : i32
    return %c0_i32, %c0_i32_0 : i32, i32
  }
  func.func @transform_2(%arg0: i32) -> (i32, i32) {
    %c0_i32 = arith.constant 0 : i32
    %c0_i32_0 = arith.constant 0 : i32
    %c0_i32_1 = arith.constant 0 : i32
    return %c0_i32, %c0_i32_0 : i32, i32
  }
  func.func @transform_3(%arg0: i32) -> (i32, i32) {
    %c0_i32 = arith.constant 0 : i32
    %c0_i32_0 = arith.constant 0 : i32
    %c0_i32_1 = arith.constant 0 : i32
    return %c0_i32, %c0_i32_0 : i32, i32
  }
  func.func @transform_4(%arg0: i32) -> (i32, i32) {
    %c0_i32 = arith.constant 0 : i32
    %c0_i32_0 = arith.constant 0 : i32
    %c0_i32_1 = arith.constant 0 : i32
    return %c0_i32, %c0_i32_0 : i32, i32
  }
  func.func @transform_5(%arg0: i32) -> (i32, i32) {
    %c0_i32 = arith.constant 0 : i32
    %c0_i32_0 = arith.constant 0 : i32
    return %c0_i32, %arg0 : i32, i32
  }
}

</mosaic_0001>

<llo_original>
// kernel: detnet_denoiser_forward.1
$region0: #{detnet_denoiser_forward.1}
  #allocation0 [shape = 'u32[]', space=smem, size = 0x4, offset = 0x4, fixed_abs, tag = 'smem constant byte address 0x4 - core index']
  #allocation1 [shape = 'u32[144,128]{1,0:T(1,128)}', space=vmem, size = 0x12000, scoped, tag = 'internal scratch']
  %s0 = inlined_call_operand.vmem [shape: f32[4,300], index: 0, kind: input, shape index: {}]
  %s1 = inlined_call_operand.vmem [shape: f32[64,4], index: 1, kind: input, shape index: {}]
  %s2 = inlined_call_operand.vmem [shape: f32[64,1], index: 2, kind: input, shape index: {}]
  %s3 = inlined_call_operand.vmem [shape: f32[8,64], index: 3, kind: input, shape index: {}]
  %s4 = inlined_call_operand.vmem [shape: f32[8,1], index: 4, kind: input, shape index: {}]
  %s5 = inlined_call_operand.hbm [shape: f32[8,300], index: 5, kind: output, shape index: {}]
  %s6 = sld [smem:[#allocation0]]
  $region53: #{detnet_denoiser_forward.1} parent=0
    _
  %s8 = ssub.s32 1, %s6
  %s9 = scalar_select 0, %s8, %s6
  $region1: #{detnet_denoiser_forward.1} parent=0
    #allocation2 [shape = 'u8[8192]{0}', space=vmem, size = 0x2000, scoped, tag = 'output window, operand 0']
    #allocation3 [shape = 's32[2]{0}', space=sflag, size = 0x8, scoped, tag = 'scoped memory for detnet_denoiser_forward.1']
    %10 = vsyncpa [#allocation3], 0
    %s11 = scalar_lea.sflag [#allocation3], 1
    %12 = vsyncpa %s11, 0
    loop: start=0, step=1, limit=5
    $region2: #{detnet_denoiser_forward.1} parent=1 // loop_pre_header
      _
    $region3: #{detnet_denoiser_forward.1} parent=1 // loop_header
      %s14 = sphi 0, %s18
      %p15 = scmp.ge.s32.totalorder %s14, 5
      %s24 = sphi 0, %s26
      %s27 = sphi 0, %s24
      %s28 = sphi 0, %s27
      %s44 = sphi 0, %s28
      %s48 = sphi 0, %s48
      %s50 = sphi 0, %s48
      %s51 = sphi 0, %s50
      %s65 = sphi 0, %s51
      %s69 = sphi 0, %s69
      %s71 = sphi 0, %s69
      %s72 = sphi 0, %s71
      %s86 = sphi 0, %s72
      %s90 = sphi 0, %s90
      %s92 = sphi 0, %s90
      %s93 = sphi 0, %s92
      %s107 = sphi 0, %s93
      %s111 = sphi 0, %s111
      %s113 = sphi 0, %s111
      %s114 = sphi 0, %s113
      %s128 = sphi 0, %s114
      %s134 = sphi 0, %s136
      %s137 = sphi 0, %s134
      %s138 = sphi 0, %s137
      %s154 = sphi 0, %s138
    $region4: #{detnet_denoiser_forward.1} parent=1 // loop_header_branch
      %17 = sbr.rel (%p15) target = $region8
    $region5: #{detnet_denoiser_forward.1} parent=1 // loop_body
      %s19 = ssub.s32 %s14, 1
      %s20 = ssub.s32 %s14, 2
      %s21 = sadd.s32 %s14, 1
      %s22 = ssub.s32 %s14, %s21
      %p23 = scmp.eq.s32.totalorder %s22, 0
      %s25 = sadd.s32 %s24, 1
      %s26 = scalar_select %p23, %s24, %s25
      %p29 = pneg %p23
      %p30 = scmp.eq.s32.totalorder %s14, 2
      %p31 = por %p29, %p30
      %p32 = scmp.ne.s32.totalorder %s24, %s27
      %p33 = scmp.eq.s32.totalorder %s14, 0
      %p34 = por %p32, %p33
      %p35 = scmp.ne.s32.totalorder %s24, %s27
      %p36 = scmp.eq.s32.totalorder %s19, 2
      %p37 = por %p35, %p36
      %p38 = scmp.ne.s32.totalorder %s27, %s28
      %p39 = scmp.eq.s32.totalorder %s19, 0
      %p40 = por %p38, %p39
      %p41 = scmp.ne.s32.totalorder %s27, %s28
      %p42 = scmp.eq.s32.totalorder %s20, 2
      %p43 = por %p41, %p42
      %p45 = scmp.ne.s32.totalorder %s28, %s44
      %p46 = scmp.eq.s32.totalorder %s20, 0
      %p47 = por %p45, %p46
      %s49 = sadd.s32 %s48, 1
      %p52 = scmp.eq.s32.totalorder %s14, 2
      %p53 = scmp.ne.s32.totalorder %s48, %s50
      %p54 = scmp.eq.s32.totalorder %s14, 0
      %p55 = por %p53, %p54
      %p56 = scmp.ne.s32.totalorder %s48, %s50
      %p57 = scmp.eq.s32.totalorder %s19, 2
      %p58 = por %p56, %p57
      %p59 = scmp.ne.s32.totalorder %s50, %s51
      %p60 = scmp.eq.s32.totalorder %s19, 0
      %p61 = por %p59, %p60
      %p62 = scmp.ne.s32.totalorder %s50, %s51
      %p63 = scmp.eq.s32.totalorder %s20, 2
      %p64 = por %p62, %p63
      %p66 = scmp.ne.s32.totalorder %s51, %s65
      %p67 = scmp.eq.s32.totalorder %s20, 0
      %p68 = por %p66, %p67
      %s70 = sadd.s32 %s69, 1
      %p73 = scmp.eq.s32.totalorder %s14, 2
      %p74 = scmp.ne.s32.totalorder %s69, %s71
      %p75 = scmp.eq.s32.totalorder %s14, 0
      %p76 = por %p74, %p75
      %p77 = scmp.ne.s32.totalorder %s69, %s71
      %p78 = scmp.eq.s32.totalorder %s19, 2
      %p79 = por %p77, %p78
      %p80 = scmp.ne.s32.totalorder %s71, %s72
      %p81 = scmp.eq.s32.totalorder %s19, 0
      %p82 = por %p80, %p81
      %p83 = scmp.ne.s32.totalorder %s71, %s72
      %p84 = scmp.eq.s32.totalorder %s20, 2
      %p85 = por %p83, %p84
      %p87 = scmp.ne.s32.totalorder %s72, %s86
      %p88 = scmp.eq.s32.totalorder %s20, 0
      %p89 = por %p87, %p88
      %s91 = sadd.s32 %s90, 1
      %p94 = scmp.eq.s32.totalorder %s14, 2
      %p95 = scmp.ne.s32.totalorder %s90, %s92
      %p96 = scmp.eq.s32.totalorder %s14, 0
      %p97 = por %p95, %p96
      %p98 = scmp.ne.s32.totalorder %s90, %s92
      %p99 = scmp.eq.s32.totalorder %s19, 2
      %p100 = por %p98, %p99
      %p101 = scmp.ne.s32.totalorder %s92, %s93
      %p102 = scmp.eq.s32.totalorder %s19, 0
      %p103 = por %p101, %p102
      %p104 = scmp.ne.s32.totalorder %s92, %s93
      %p105 = scmp.eq.s32.totalorder %s20, 2
      %p106 = por %p104, %p105
      %p108 = scmp.ne.s32.totalorder %s93, %s107
      %p109 = scmp.eq.s32.totalorder %s20, 0
      %p110 = por %p108, %p109
      %s112 = sadd.s32 %s111, 1
      %p115 = scmp.eq.s32.totalorder %s14, 2
      %p116 = scmp.ne.s32.totalorder %s111, %s113
      %p117 = scmp.eq.s32.totalorder %s14, 0
      %p118 = por %p116, %p117
      %p119 = scmp.ne.s32.totalorder %s111, %s113
      %p120 = scmp.eq.s32.totalorder %s19, 2
      %p121 = por %p119, %p120
      %p122 = scmp.ne.s32.totalorder %s113, %s114
      %p123 = scmp.eq.s32.totalorder %s19, 0
      %p124 = por %p122, %p123
      %p125 = scmp.ne.s32.totalorder %s113, %s114
      %p126 = scmp.eq.s32.totalorder %s20, 2
      %p127 = por %p125, %p126
      %p129 = scmp.ne.s32.totalorder %s114, %s128
      %p130 = scmp.eq.s32.totalorder %s20, 0
      %p131 = por %p129, %p130
      %s132 = ssub.s32 %s14, %s21
      %p133 = scmp.eq.s32.totalorder %s132, 0
      %s135 = sadd.s32 %s134, 1
      %s136 = scalar_select %p133, %s134, %s135
      %p139 = pneg %p133
      %p140 = scmp.eq.s32.totalorder %s14, 2
      %p141 = por %p139, %p140
      %p142 = scmp.ne.s32.totalorder %s134, %s137
      %p143 = scmp.eq.s32.totalorder %s14, 0
      %p144 = por %p142, %p143
      %p145 = scmp.ne.s32.totalorder %s134, %s137
      %p146 = scmp.eq.s32.totalorder %s19, 2
      %p147 = por %p145, %p146
      %p148 = scmp.ne.s32.totalorder %s137, %s138
      %p149 = scmp.eq.s32.totalorder %s19, 0
      %p150 = por %p148, %p149
      %p151 = scmp.ne.s32.totalorder %s137, %s138
      %p152 = scmp.eq.s32.totalorder %s20, 2
      %p153 = por %p151, %p152
      %p155 = scmp.ne.s32.totalorder %s138, %s154
      %p156 = scmp.eq.s32.totalorder %s20, 0
      %p157 = por %p155, %p156
      %p158 = scmp.le.s32.totalorder 1, %s14
      %p159 = scmp.lt.s32.totalorder %s14, 4
      %p160 = pnand %p158, %p159
      %p161 = pneg %p160
      // Predicated region
      $region9: #{detnet_denoiser_forward.1} parent=5 // pred_check
        _
      $region10: #{detnet_denoiser_forward.1} parent=5 // pred_check_branch
        %163 = sbr.rel (%p160) target = $region12
      $region11: #{detnet_denoiser_forward.1} parent=5 // pred_region
        %s164 = ssub.s32 %s14, 1
        // Predicated region
        $region13: #{detnet_denoiser_forward.1} parent=11 // pred_check
          %p165 = pneg %p61
        $region14: #{detnet_denoiser_forward.1} parent=11 // pred_check_branch
          %167 = sbr.rel (%p165) target = $region16
        $region15: #{detnet_denoiser_forward.1} parent=11 // pred_region
          _
        $region16: #{detnet_denoiser_forward.1} parent=11 // pred_fallthru
          _
        // Predicated region
        $region17: #{detnet_denoiser_forward.1} parent=11 // pred_check
          %p168 = pneg %p82
        $region18: #{detnet_denoiser_forward.1} parent=11 // pred_check_branch
          %170 = sbr.rel (%p168) target = $region20
        $region19: #{detnet_denoiser_forward.1} parent=11 // pred_region
          _
        $region20: #{detnet_denoiser_forward.1} parent=11 // pred_fallthru
          _
        // Predicated region
        $region21: #{detnet_denoiser_forward.1} parent=11 // pred_check
          %p171 = pneg %p103
        $region22: #{detnet_denoiser_forward.1} parent=11 // pred_check_branch
          %173 = sbr.rel (%p171) target = $region24
        $region23: #{detnet_denoiser_forward.1} parent=11 // pred_region
          _
        $region24: #{detnet_denoiser_forward.1} parent=11 // pred_fallthru
          _
        // Predicated region
        $region25: #{detnet_denoiser_forward.1} parent=11 // pred_check
          %p174 = pneg %p124
        $region26: #{detnet_denoiser_forward.1} parent=11 // pred_check_branch
          %176 = sbr.rel (%p174) target = $region28
        $region27: #{detnet_denoiser_forward.1} parent=11 // pred_region
          _
        $region28: #{detnet_denoiser_forward.1} parent=11 // pred_fallthru
          _
      $region12: #{detnet_denoiser_forward.1} parent=5 // pred_fallthru
        _
      %p177 = scmp.lt.s32.totalorder %s14, 3
      // Predicated region
      $region29: #{detnet_denoiser_forward.1} parent=5 // pred_check
        %p178 = pneg %p177
      $region30: #{detnet_denoiser_forward.1} parent=5 // pred_check_branch
        %180 = sbr.rel (%p178) target = $region32
      $region31: #{detnet_denoiser_forward.1} parent=5 // pred_region
        // Predicated region
        $region33: #{detnet_denoiser_forward.1} parent=31 // pred_check
          %p181 = pneg %p34
        $region34: #{detnet_denoiser_forward.1} parent=31 // pred_check_branch
          %183 = sbr.rel (%p181) target = $region36
        $region35: #{detnet_denoiser_forward.1} parent=31 // pred_region
          %p184 = scmp.lt.s32.totalorder %s14, 2
          %s185 = scalar_select %p184, %s14, 2
          %s186 = smul.addr %s185, 4
          %s187 = scalar_lea.vmem %s0, %s186
        $region36: #{detnet_denoiser_forward.1} parent=31 // pred_fallthru
          _
      $region32: #{detnet_denoiser_forward.1} parent=5 // pred_fallthru
        _
      %p188 = scmp.le.s32.totalorder 1, %s14
      %p189 = scmp.lt.s32.totalorder %s14, 4
      %p190 = pnand %p188, %p189
      %p191 = pneg %p190
      // Predicated region
      $region37: #{detnet_denoiser_forward.1} parent=5 // pred_check
        _
      $region38: #{detnet_denoiser_forward.1} parent=5 // pred_check_branch
        %193 = sbr.rel (%p190) target = $region40
      $region39: #{detnet_denoiser_forward.1} parent=5 // pred_region
        %s194 = ssub.s32 %s14, 1
        %p195 = scmp.lt.s32.totalorder %s19, 2
        %s196 = scalar_select %p195, %s19, 2
        %s197 = smul.addr %s196, 4
        %s198 = scalar_lea.vmem %s0, %s197
        %p199 = pneg %p40
        %p200 = pneg %p37
        %p201 = pneg %p61
        %p202 = pneg %p58
        %p203 = pneg %p82
        %p204 = pneg %p79
        %p205 = pneg %p103
        %p206 = pneg %p100
        %p207 = pneg %p124
        %p208 = pneg %p121
        %p209 = pneg %p150
        %p210 = pneg %p147
        %s211 = sand.u32 %s137, 1
        %s212 = scalar_lea.sflag [#allocation3], %s211
        %s213 = sand.u32 %s137, 1
        %s214 = smul.addr %s213, 8
        %s215 = scalar_lea.vmem [#allocation2], %s214
        %p216 = scmp.lt.s32.totalorder %s19, 2
        %s217 = scalar_select %p216, %s19, 2
        %s218 = smul.addr %s217, 4
        %s219 = scalar_lea.vmem %s0, %s218
        %v220 = vld [vmem:[%s1] sm:$0xff]
        %v221 = vld [vmem:[%s1 + $0x8] sm:$0xff]
        %v222 = vld [vmem:[%s1 + $0x10] sm:$0xff]
        %v223 = vld [vmem:[%s1 + $0x18] sm:$0xff]
        %v224 = vld [vmem:[%s1 + $0x20] sm:$0xff]
        %v225 = vld [vmem:[%s1 + $0x28] sm:$0xff]
        %v226 = vld [vmem:[%s1 + $0x30] sm:$0xff]
        %v227 = vld [vmem:[%s1 + $0x38] sm:$0xff]
        %v228 = vld [vmem:[%s2] sm:$0xff]
        %v229 = vld [vmem:[%s2 + $0x8] sm:$0xff]
        %v230 = vld [vmem:[%s2 + $0x10] sm:$0xff]
        %v231 = vld [vmem:[%s2 + $0x18] sm:$0xff]
        %v232 = vld [vmem:[%s2 + $0x20] sm:$0xff]
        %v233 = vld [vmem:[%s2 + $0x28] sm:$0xff]
        %v234 = vld [vmem:[%s2 + $0x30] sm:$0xff]
        %v235 = vld [vmem:[%s2 + $0x38] sm:$0xff]
        %v236 = vld [vmem:[%s3] sm:$0xff]
        %v237 = vld [vmem:[%s4] sm:$0xff]
        %v238 = vld [vmem:[%s219] sm:$0xf]
        %240 = vset.pattern.permute.xlu0 0
        %241 = vperm.xlu0 %240, %v220
        %v242 = vpop.permute.xlu0 %241
        %245 = vset.pattern.permute.xlu0 0
        %246 = vperm.xlu0 %245, %v221
        %v247 = vpop.permute.xlu0 %246
        %250 = vset.pattern.permute.xlu0 0
        %251 = vperm.xlu0 %250, %v222
        %v252 = vpop.permute.xlu0 %251
        %255 = vset.pattern.permute.xlu0 0
        %256 = vperm.xlu0 %255, %v223
        %v257 = vpop.permute.xlu0 %256
        %260 = vset.pattern.permute.xlu0 0
        %261 = vperm.xlu0 %260, %v224
        %v262 = vpop.permute.xlu0 %261
        %265 = vset.pattern.permute.xlu0 0
        %266 = vperm.xlu0 %265, %v225
        %v267 = vpop.permute.xlu0 %266
        %270 = vset.pattern.permute.xlu0 0
        %271 = vperm.xlu0 %270, %v226
        %v272 = vpop.permute.xlu0 %271
        %275 = vset.pattern.permute.xlu0 0
        %276 = vperm.xlu0 %275, %v227
        %v277 = vpop.permute.xlu0 %276
        %v279 = vlaneseq
        %v280 = vshrl.u32 %v279, 7
        %v281 = vsub.s32 0, %v280
        %v282 = vrot.slane %v238, %v281
        %v283 = vmul.f32 %v242, %v282
        %v284 = vmul.f32 %v247, %v282
        %v285 = vmul.f32 %v252, %v282
        %v286 = vmul.f32 %v257, %v282
        %v287 = vmul.f32 %v262, %v282
        %v288 = vmul.f32 %v267, %v282
        %v289 = vmul.f32 %v272, %v282
        %v290 = vmul.f32 %v277, %v282
        %292 = vset.pattern.permute.xlu0 0
        %293 = vperm.xlu0 %292, %v228
        %v294 = vpop.permute.xlu0 %293
        %297 = vset.pattern.permute.xlu0 0
        %298 = vperm.xlu0 %297, %v229
        %v299 = vpop.permute.xlu0 %298
        %302 = vset.pattern.permute.xlu0 0
        %303 = vperm.xlu0 %302, %v230
        %v304 = vpop.permute.xlu0 %303
        %307 = vset.pattern.permute.xlu0 0
        %308 = vperm.xlu0 %307, %v231
        %v309 = vpop.permute.xlu0 %308
        %312 = vset.pattern.permute.xlu0 0
        %313 = vperm.xlu0 %312, %v232
        %v314 = vpop.permute.xlu0 %313
        %317 = vset.pattern.permute.xlu0 0
        %318 = vperm.xlu0 %317, %v233
        %v319 = vpop.permute.xlu0 %318
        %322 = vset.pattern.permute.xlu0 0
        %323 = vperm.xlu0 %322, %v234
        %v324 = vpop.permute.xlu0 %323
        %327 = vset.pattern.permute.xlu0 0
        %328 = vperm.xlu0 %327, %v235
        %v329 = vpop.permute.xlu0 %328
        %v331 = vadd.f32 %v294, %v283
        %v332 = vadd.f32 %v299, %v284
        %v333 = vadd.f32 %v304, %v285
        %v334 = vadd.f32 %v309, %v286
        %v335 = vadd.f32 %v314, %v287
        %v336 = vadd.f32 %v319, %v288
        %v337 = vadd.f32 %v324, %v289
        %v338 = vadd.f32 %v329, %v290
        %339 = vset.pattern.permute.xlu0 1
        %340 = vperm.xlu0 %339, %v220
        %v341 = vpop.permute.xlu0 %340
        %343 = vset.pattern.permute.xlu0 1
        %344 = vperm.xlu0 %343, %v221
        %v345 = vpop.permute.xlu0 %344
        %347 = vset.pattern.permute.xlu0 1
        %348 = vperm.xlu0 %347, %v222
        %v349 = vpop.permute.xlu0 %348
        %351 = vset.pattern.permute.xlu0 1
        %352 = vperm.xlu0 %351, %v223
        %v353 = vpop.permute.xlu0 %352
        %355 = vset.pattern.permute.xlu0 1
        %356 = vperm.xlu0 %355, %v224
        %v357 = vpop.permute.xlu0 %356
        %359 = vset.pattern.permute.xlu0 1
        %360 = vperm.xlu0 %359, %v225
        %v361 = vpop.permute.xlu0 %360
        %363 = vset.pattern.permute.xlu0 1
        %364 = vperm.xlu0 %363, %v226
        %v365 = vpop.permute.xlu0 %364
        %367 = vset.pattern.permute.xlu0 1
        %368 = vperm.xlu0 %367, %v227
        %v369 = vpop.permute.xlu0 %368
        %v371 = vlaneseq
        %v372 = vshrl.u32 %v371, 7
        %v373 = vsub.s32 1, %v372
        %v374 = vrot.slane %v238, %v373
        %v375 = vmul.f32 %v341, %v374
        %v376 = vmul.f32 %v345, %v374
        %v377 = vmul.f32 %v349, %v374
        %v378 = vmul.f32 %v353, %v374
        %v379 = vmul.f32 %v357, %v374
        %v380 = vmul.f32 %v361, %v374
        %v381 = vmul.f32 %v365, %v374
        %v382 = vmul.f32 %v369, %v374
        %v383 = vadd.f32 %v331, %v375
        %v384 = vadd.f32 %v332, %v376
        %v385 = vadd.f32 %v333, %v377
        %v386 = vadd.f32 %v334, %v378
        %v387 = vadd.f32 %v335, %v379
        %v388 = vadd.f32 %v336, %v380
        %v389 = vadd.f32 %v337, %v381
        %v390 = vadd.f32 %v338, %v382
        %391 = vset.pattern.permute.xlu0 2
        %392 = vperm.xlu0 %391, %v220
        %v393 = vpop.permute.xlu0 %392
        %395 = vset.pattern.permute.xlu0 2
        %396 = vperm.xlu0 %395, %v221
        %v397 = vpop.permute.xlu0 %396
        %399 = vset.pattern.permute.xlu0 2
        %400 = vperm.xlu0 %399, %v222
        %v401 = vpop.permute.xlu0 %400
        %403 = vset.pattern.permute.xlu0 2
        %404 = vperm.xlu0 %403, %v223
        %v405 = vpop.permute.xlu0 %404
        %407 = vset.pattern.permute.xlu0 2
        %408 = vperm.xlu0 %407, %v224
        %v409 = vpop.permute.xlu0 %408
        %411 = vset.pattern.permute.xlu0 2
        %412 = vperm.xlu0 %411, %v225
        %v413 = vpop.permute.xlu0 %412
        %415 = vset.pattern.permute.xlu0 2
        %416 = vperm.xlu0 %415, %v226
        %v417 = vpop.permute.xlu0 %416
        %419 = vset.pattern.permute.xlu0 2
        %420 = vperm.xlu0 %419, %v227
        %v421 = vpop.permute.xlu0 %420
        %v423 = vlaneseq
        %v424 = vshrl.u32 %v423, 7
        %v425 = vsub.s32 2, %v424
        %v426 = vrot.slane %v238, %v425
        %v427 = vmul.f32 %v393, %v426
        %v428 = vmul.f32 %v397, %v426
        %v429 = vmul.f32 %v401, %v426
        %v430 = vmul.f32 %v405, %v426
        %v431 = vmul.f32 %v409, %v426
        %v432 = vmul.f32 %v413, %v426
        %v433 = vmul.f32 %v417, %v426
        %v434 = vmul.f32 %v421, %v426
        %v435 = vadd.f32 %v383, %v427
        %v436 = vadd.f32 %v384, %v428
        %v437 = vadd.f32 %v385, %v429
        %v438 = vadd.f32 %v386, %v430
        %v439 = vadd.f32 %v387, %v431
        %v440 = vadd.f32 %v388, %v432
        %v441 = vadd.f32 %v389, %v433
        %v442 = vadd.f32 %v390, %v434
        %443 = vset.pattern.permute.xlu0 3
        %444 = vperm.xlu0 %443, %v220
        %v445 = vpop.permute.xlu0 %444
        %447 = vset.pattern.permute.xlu0 3
        %448 = vperm.xlu0 %447, %v221
        %v449 = vpop.permute.xlu0 %448
        %451 = vset.pattern.permute.xlu0 3
        %452 = vperm.xlu0 %451, %v222
        %v453 = vpop.permute.xlu0 %452
        %455 = vset.pattern.permute.xlu0 3
        %456 = vperm.xlu0 %455, %v223
        %v457 = vpop.permute.xlu0 %456
        %459 = vset.pattern.permute.xlu0 3
        %460 = vperm.xlu0 %459, %v224
        %v461 = vpop.permute.xlu0 %460
        %463 = vset.pattern.permute.xlu0 3
        %464 = vperm.xlu0 %463, %v225
        %v465 = vpop.permute.xlu0 %464
        %467 = vset.pattern.permute.xlu0 3
        %468 = vperm.xlu0 %467, %v226
        %v469 = vpop.permute.xlu0 %468
        %471 = vset.pattern.permute.xlu0 3
        %472 = vperm.xlu0 %471, %v227
        %v473 = vpop.permute.xlu0 %472
        %v475 = vlaneseq
        %v476 = vshrl.u32 %v475, 7
        %v477 = vsub.s32 3, %v476
        %v478 = vrot.slane %v238, %v477
        %v479 = vmul.f32 %v445, %v478
        %v480 = vmul.f32 %v449, %v478
        %v481 = vmul.f32 %v453, %v478
        %v482 = vmul.f32 %v457, %v478
        %v483 = vmul.f32 %v461, %v478
        %v484 = vmul.f32 %v465, %v478
        %v485 = vmul.f32 %v469, %v478
        %v486 = vmul.f32 %v473, %v478
        %v487 = vadd.f32 %v435, %v479
        %v488 = vadd.f32 %v436, %v480
        %v489 = vadd.f32 %v437, %v481
        %v490 = vadd.f32 %v438, %v482
        %v491 = vadd.f32 %v439, %v483
        %v492 = vadd.f32 %v440, %v484
        %v493 = vadd.f32 %v441, %v485
        %v494 = vadd.f32 %v442, %v486
        %v495 = vmax.f32 %v487, 0.0
        %v496 = vmax.f32 %v488, 0.0
        %v497 = vmax.f32 %v489, 0.0
        %v498 = vmax.f32 %v490, 0.0
        %v499 = vmax.f32 %v491, 0.0
        %v500 = vmax.f32 %v492, 0.0
        %v501 = vmax.f32 %v493, 0.0
        %v502 = vmax.f32 %v494, 0.0
        %504 = vset.pattern.permute.xlu0 0
        %505 = vperm.xlu0 %504, %v237
        %v506 = vpop.permute.xlu0 %505
        %vm508 = vcmask 523264
        %v510 = vsel %vm508, %v236, 0
        %512 = vmatprep.subr.mxu0 0.0
        %513 = vmatpush1.msra.mxu0 %v495
        %514 = vmatprep.subr.mxu0 0.0
        %515 = vmatpush1.msra.mxu0 %v496
        %516 = vmatprep.subr.mxu0 0.0
        %517 = vmatpush1.msra.mxu0 %v497
        %518 = vmatprep.subr.mxu0 0.0
        %519 = vmatpush1.msra.mxu0 %v498
        %520 = vmatprep.subr.mxu0 0.0
        %521 = vmatpush1.msra.mxu0 %v499
        %522 = vmatprep.subr.mxu0 0.0
        %523 = vmatpush1.msra.mxu0 %v500
        %524 = vmatprep.subr.mxu0 0.0
        %525 = vmatpush1.msra.mxu0 %v501
        %526 = vmatprep.subr.mxu0 0.0
        %527 = vmatpush1.msra.mxu0 %v502
        %528 = vmatprep.subr.mxu0 0.0
        %529 = vmatpush1.msra.mxu0 0.0
        %530 = vmatprep.subr.mxu0 0.0
        %531 = vmatpush1.msra.mxu0 0.0
        %532 = vmatprep.subr.mxu0 0.0
        %533 = vmatpush1.msra.mxu0 0.0
        %534 = vmatprep.subr.mxu0 0.0
        %535 = vmatpush1.msra.mxu0 0.0
        %536 = vmatprep.subr.mxu0 0.0
        %537 = vmatpush1.msra.mxu0 0.0
        %538 = vmatprep.subr.mxu0 0.0
        %539 = vmatpush1.msra.mxu0 0.0
        %540 = vmatprep.subr.mxu0 0.0
        %541 = vmatpush1.msra.mxu0 0.0
        %542 = vmatprep.subr.mxu0 0.0
        %543 = vmatpush1.msra.mxu0 0.0
        %544 = vmatprep.subr.mxu0 0.0
        %545 = vmatpush1.msra.mxu0 0.0
        %546 = vmatprep.subr.mxu0 0.0
        %547 = vmatpush1.msra.mxu0 0.0
        %548 = vmatprep.subr.mxu0 0.0
        %549 = vmatpush1.msra.mxu0 0.0
        %550 = vmatprep.subr.mxu0 0.0
        %551 = vmatpush1.msra.mxu0 0.0
        %552 = vmatprep.subr.mxu0 0.0
        %553 = vmatpush1.msra.mxu0 0.0
        %554 = vmatprep.subr.mxu0 0.0
        %555 = vmatpush1.msra.mxu0 0.0
        %556 = vmatprep.subr.mxu0 0.0
        %557 = vmatpush1.msra.mxu0 0.0
        %558 = vmatprep.subr.mxu0 0.0
        %559 = vmatpush1.msra.mxu0 0.0
        %560 = vmatprep.subr.mxu0 0.0
        %561 = vmatpush1.msra.mxu0 0.0
        %562 = vmatprep.subr.mxu0 0.0
        %563 = vmatpush1.msra.mxu0 0.0
        %564 = vmatprep.subr.mxu0 0.0
        %565 = vmatpush1.msra.mxu0 0.0
        %566 = vmatprep.subr.mxu0 0.0
        %567 = vmatpush1.msra.mxu0 0.0
        %568 = vmatprep.subr.mxu0 0.0
        %569 = vmatpush1.msra.mxu0 0.0
        %570 = vmatprep.subr.mxu0 0.0
        %571 = vmatpush1.msra.mxu0 0.0
        %572 = vmatprep.subr.mxu0 0.0
        %573 = vmatpush1.msra.mxu0 0.0
        %574 = vmatprep.subr.mxu0 0.0
        %575 = vmatpush1.msra.mxu0 0.0
        %576 = vmatprep.mubr.f32.mxu0 0.0
        %577 = vmatmul.mubr.f32.gmra.mrb[0].mxu0 %v510
        %v578 = vpop.f32.mrb[0].mxu0
        %v579 = vadd.f32 %v506, %v578
        %v580 = vpop.f32.mrb[0].mxu0
        %581 = vdwg.mxu0
        %582 = vst [vmem:[%s215] sm:$0xff] %v579
        %s583 = sand.u32 %s137, 1
        %s584 = scalar_lea.sflag [#allocation3], %s583
        %s585 = sand.u32 %s137, 1
        %s586 = smul.addr %s585, 8
        %s587 = scalar_lea.vmem [#allocation2], %s586
        // Predicated region
        $region41: #{detnet_denoiser_forward.1} parent=39 // pred_check
          %p588 = pneg %p147
        $region42: #{detnet_denoiser_forward.1} parent=39 // pred_check_branch
          %590 = sbr.rel (%p588) target = $region44
        $region43: #{detnet_denoiser_forward.1} parent=39 // pred_region
          %s592 = ssub.s32 128, 128
          %593 = vsyncadd %s584, %s592
          %s594 = smul.addr %s19, 128
          %s595 = scalar_lea.hbm %s5, %s594
          %s597 = sshll.u32 %s587, 4
          %s598 = int_to_ptr.vmem [resolvable:$true] %s597
          %600 = dma.vmem_to_hbm [thread:$0]  %s598, 128, %s595, %s584
        $region44: #{detnet_denoiser_forward.1} parent=39 // pred_fallthru
          _
      $region40: #{detnet_denoiser_forward.1} parent=5 // pred_fallthru
        _
      %p601 = scmp.le.s32.totalorder 2, %s14
      // Predicated region
      $region45: #{detnet_denoiser_forward.1} parent=5 // pred_check
        %p602 = pneg %p601
      $region46: #{detnet_denoiser_forward.1} parent=5 // pred_check_branch
        %604 = sbr.rel (%p602) target = $region48
      $region47: #{detnet_denoiser_forward.1} parent=5 // pred_region
        %s605 = ssub.s32 %s14, 2
        // Predicated region
        $region49: #{detnet_denoiser_forward.1} parent=47 // pred_check
          %p606 = pneg %p153
        $region50: #{detnet_denoiser_forward.1} parent=47 // pred_check_branch
          %608 = sbr.rel (%p606) target = $region52
        $region51: #{detnet_denoiser_forward.1} parent=47 // pred_region
          %s609 = sand.u32 %s138, 1
          %s610 = scalar_lea.sflag [#allocation3], %s609
          %s611 = sand.u32 %s138, 1
          %s612 = smul.addr %s611, 8
          %s613 = scalar_lea.vmem [#allocation2], %s612
          %614 = dma.done %s610, 128
        $region52: #{detnet_denoiser_forward.1} parent=47 // pred_fallthru
          _
      $region48: #{detnet_denoiser_forward.1} parent=5 // pred_fallthru
        _
    $region6: #{detnet_denoiser_forward.1} parent=1 // loop_footer
      %s18 = sadd.s32 1, %s14
    $region7: #{detnet_denoiser_forward.1} parent=1 // loop_footer_branch
      %13 = sbr.rel target = $region3
    $region8: #{detnet_denoiser_forward.1} parent=1 // loop_exit
      _
    %615 = vsyncpa [#allocation3], 1
    %s616 = scalar_lea.sflag [#allocation3], 1
    %617 = vsyncpa %s616, 1

</llo_original>
